<compile_context>
chip_gen: v6e
topology: v6e:2x2x1
jax: 0.10.0
libtpu: 0.0.40
codegen_flags: <defaults>
</compile_context>

<pallas_src>
import jax
import jax.numpy as jnp
from jax.experimental import pallas as pl
from jax.experimental.pallas import tpu as pltpu

# "NT" matmul: contract the last dim of both operands (A @ B^T) -- native MXU form,
# no materialised weight transpose (same dimension numbers the TPU flash-attention
# reference kernel uses).
_NT_DIMS = (((1,), (1,)), ((), ()))


def _sensor_encoder_kernel(x_ref, w_ih_ref, w_hh_ref, bias_ref, out_ref):
    """Fused SensorEncoder forward: input projection + full LSTM recurrence.

    x_ref:    (T*B, D) time-major rows (row t*B + b == x[b, t, :]).
    w_ih_ref: (4H, D)  PyTorch weight_ih_l0.
    w_hh_ref: (4H, H)  PyTorch weight_hh_l0.
    bias_ref: (1, 4H)  b_ih + b_hh.
    out_ref:  (B, H)   final hidden state h_T  (== hn.squeeze(0)).
    """
    TB, _ = x_ref.shape
    B, H = out_ref.shape
    T = TB // B

    # Loaded once; held in vregs for the whole unrolled recurrence.
    w_ih = w_ih_ref[...]                       # (4H, D)
    w_hh = w_hh_ref[...]                       # (4H, H)
    bias = bias_ref[...]                       # (1, 4H)

    # Non-recurrent projection for ALL timesteps in one MXU op (parallel work, off the
    # serial critical path), emitted time-major: (T*B, 4H).
    xproj = jax.lax.dot_general(
        x_ref[...], w_ih, _NT_DIMS, preferred_element_type=jnp.float32
    ) + bias

    h = jnp.zeros((B, H), jnp.float32)
    c = jnp.zeros((B, H), jnp.float32)

    # T is tiny and static -> fully static Python unroll.
    for t in range(T):
        # Only this matmul sits on the serial critical path (one MXU push per step).
        rec = jax.lax.dot_general(
            h, w_hh, _NT_DIMS, preferred_element_type=jnp.float32
        )                                                           # (B, 4H)
        gates = xproj[t * B:(t + 1) * B, :] + rec                   # contiguous (B, 4H)

        # Two full-vreg transcendentals per step instead of four sliced ones:
        #   sigmoid(x) == 0.5 * (tanh(0.5 x) + 1)   -> covers the i/f/o lanes,
        #   tanh(x)                                  -> covers the g lanes.
        sig_all = 0.5 * (jnp.tanh(0.5 * gates) + 1.0)
        tanh_all = jnp.tanh(gates)
        i_g = sig_all[:, 0 * H:1 * H]
        f_g = sig_all[:, 1 * H:2 * H]
        g_g = tanh_all[:, 2 * H:3 * H]
        o_g = sig_all[:, 3 * H:4 * H]

        c = f_g * c + i_g * g_g
        h = o_g * jnp.tanh(c)

    out_ref[...] = h.astype(out_ref.dtype)


def sensor_encoder_forward(x, w_ih, w_hh, b_ih, b_hh):
    """SensorEncoder.forward: final hidden state hn.squeeze(0) of a 1-layer LSTM.

    x: (B, T, D) float32, batch_first (like PyTorch).
    w_ih: (4H, D), w_hh: (4H, H), b_ih/b_hh: (4H,)  -- PyTorch LSTM parameters.
    Returns (B, H).
    """
    B, T, D = x.shape
    H = w_ih.shape[0] // 4
    assert T >= 1, "SensorEncoder requires a non-empty sequence (as does nn.LSTM)"

    f32 = jnp.float32
    # Layout plumbing only (256 B at these shapes): time-major rows so each step's gate
    # slab is one contiguous B-sublane slice inside the kernel.
    x_tm = jnp.reshape(jnp.transpose(x.astype(f32), (1, 0, 2)), (T * B, D))
    # Summed bias; in a real model this (like any weight prep) is hoisted to init time.
    bias = (b_ih.astype(f32) + b_hh.astype(f32))[None, :]           # (1, 4H)

    return pl.pallas_call(
        _sensor_encoder_kernel,
        out_shape=jax.ShapeDtypeStruct((B, H), f32),
        in_specs=[
            pl.BlockSpec(memory_space=pltpu.MemorySpace.VMEM),  # x_tm, fully resident
            pl.BlockSpec(memory_space=pltpu.MemorySpace.VMEM),  # w_ih
            pl.BlockSpec(memory_space=pltpu.MemorySpace.VMEM),  # w_hh
            pl.BlockSpec(memory_space=pltpu.MemorySpace.VMEM),  # bias
        ],
        out_specs=pl.BlockSpec(memory_space=pltpu.MemorySpace.VMEM),
    )(x_tm, w_ih.astype(f32), w_hh.astype(f32), bias)


def _reference_lstm(x, w_ih, w_hh, b_ih, b_hh):
    """Pure-JAX reference matching PyTorch nn.LSTM's final hidden state."""
    B, T, D = x.shape
    H = w_ih.shape[0] // 4
    hp = jax.lax.Precision.HIGHEST

    def step(carry, x_t):
        h, c = carry
        gates = (
            jnp.dot(x_t, w_ih.T, precision=hp)
            + jnp.dot(h, w_hh.T, precision=hp)
            + b_ih + b_hh
        )
        i = jax.nn.sigmoid(gates[:, 0 * H:1 * H])
        f = jax.nn.sigmoid(gates[:, 1 * H:2 * H])
        g = jnp.tanh(gates[:, 2 * H:3 * H])
        o = jax.nn.sigmoid(gates[:, 3 * H:4 * H])
        c = f * c + i * g
        h = o * jnp.tanh(c)
        return (h, c), None

    init = (jnp.zeros((B, H), jnp.float32), jnp.zeros((B, H), jnp.float32))
    (h, _), _ = jax.lax.scan(step, init, jnp.transpose(x, (1, 0, 2)))
    return h


if __name__ == "__main__":
    # Small shapes consistent with the module: batch=2, seq=8, input_dim=4, hidden=32.
    B, T, D, H = 2, 8, 4, 32

    key = jax.random.PRNGKey(0)
    kx, k1, k2, k3, k4 = jax.random.split(key, 5)

    # Deterministic param init, mirroring PyTorch's U(-1/sqrt(H), 1/sqrt(H)).
    bound = 1.0 / (H ** 0.5)
    x = jax.random.normal(kx, (B, T, D), dtype=jnp.float32)
    w_ih = jax.random.uniform(k1, (4 * H, D), minval=-bound, maxval=bound, dtype=jnp.float32)
    w_hh = jax.random.uniform(k2, (4 * H, H), minval=-bound, maxval=bound, dtype=jnp.float32)
    b_ih = jax.random.uniform(k3, (4 * H,), minval=-bound, maxval=bound, dtype=jnp.float32)
    b_hh = jax.random.uniform(k4, (4 * H,), minval=-bound, maxval=bound, dtype=jnp.float32)

    fwd = jax.jit(sensor_encoder_forward)
    out = jax.block_until_ready(fwd(x, w_ih, w_hh, b_ih, b_hh))

    ref = _reference_lstm(x, w_ih, w_hh, b_ih, b_hh)
    assert out.shape == (B, H)
    # Slightly looser atol than the exp-form reference: the tanh-form sigmoid on the
    # serial chain differs from jax.nn.sigmoid only at the ~1e-6 rounding level.
    assert jnp.allclose(out, ref, atol=2e-5, rtol=1e-5), "mismatch vs JAX reference"

    print("KERNEL_OK")
</pallas_src>

<mosaic_0001>
module attributes {stable_mosaic.version = 11 : i64} {
  func.func @_sensor_encoder_kernel(%arg0: memref<16x4xf32, #tpu.memory_space<vmem>>, %arg1: memref<128x4xf32, #tpu.memory_space<vmem>>, %arg2: memref<128x32xf32, #tpu.memory_space<vmem>>, %arg3: memref<1x128xf32, #tpu.memory_space<vmem>>, %arg4: memref<2x32xf32, #tpu.memory_space<vmem>>) attributes {dimension_semantics = [], scalar_prefetch = 0 : i64, scratch_operands = 0 : i64, tpu.core_type = #tpu.core_type<tc>} {
    %c0 = arith.constant 0 : index
    %c0_0 = arith.constant 0 : index
    %0 = vector.load %arg1[%c0, %c0_0] : memref<128x4xf32, #tpu.memory_space<vmem>>, vector<128x4xf32>
    %c0_1 = arith.constant 0 : index
    %c0_2 = arith.constant 0 : index
    %1 = vector.load %arg2[%c0_1, %c0_2] : memref<128x32xf32, #tpu.memory_space<vmem>>, vector<128x32xf32>
    %c0_3 = arith.constant 0 : index
    %c0_4 = arith.constant 0 : index
    %2 = vector.load %arg3[%c0_3, %c0_4] : memref<1x128xf32, #tpu.memory_space<vmem>>, vector<1x128xf32>
    %c0_5 = arith.constant 0 : index
    %c0_6 = arith.constant 0 : index
    %3 = vector.load %arg0[%c0_5, %c0_6] : memref<16x4xf32, #tpu.memory_space<vmem>>, vector<16x4xf32>
    %cst = arith.constant dense<0.000000e+00> : vector<16x128xf32>
    %4 = tpu.matmul %3, %0, %cst {dimension_numbers = #tpu.dot_dimension_numbers<[1], [1], [0], [0], [0, 0, 1, 0], [], []>} : vector<16x4xf32>, vector<128x4xf32>, vector<16x128xf32> -> vector<16x128xf32>
    %5 = vector.broadcast %2 : vector<1x128xf32> to vector<16x128xf32>
    %6 = arith.addf %4, %5 : vector<16x128xf32>
    %cst_7 = arith.constant 0.000000e+00 : f32
    %7 = vector.broadcast %cst_7 : f32 to vector<2x32xf32>
    %cst_8 = arith.constant 0.000000e+00 : f32
    %8 = vector.broadcast %cst_8 : f32 to vector<2x32xf32>
    %cst_9 = arith.constant dense<0.000000e+00> : vector<2x128xf32>
    %9 = tpu.matmul %7, %1, %cst_9 {dimension_numbers = #tpu.dot_dimension_numbers<[1], [1], [0], [0], [0, 0, 1, 0], [], []>} : vector<2x32xf32>, vector<128x32xf32>, vector<2x128xf32> -> vector<2x128xf32>
    %10 = vector.extract_strided_slice %6 {offsets = [0, 0], sizes = [2, 128], strides = [1, 1]} : vector<16x128xf32> to vector<2x128xf32>
    %11 = arith.addf %10, %9 : vector<2x128xf32>
    %cst_10 = arith.constant 5.000000e-01 : f32
    %12 = vector.broadcast %cst_10 : f32 to vector<2x128xf32>
    %13 = arith.mulf %12, %11 : vector<2x128xf32>
    %14 = math.tanh %13 : vector<2x128xf32>
    %cst_11 = arith.constant 1.000000e+00 : f32
    %15 = vector.broadcast %cst_11 : f32 to vector<2x128xf32>
    %16 = arith.addf %14, %15 : vector<2x128xf32>
    %cst_12 = arith.constant 5.000000e-01 : f32
    %17 = vector.broadcast %cst_12 : f32 to vector<2x128xf32>
    %18 = arith.mulf %17, %16 : vector<2x128xf32>
    %19 = math.tanh %11 : vector<2x128xf32>
    %20 = vector.extract_strided_slice %18 {offsets = [0, 0], sizes = [2, 32], strides = [1, 1]} : vector<2x128xf32> to vector<2x32xf32>
    %21 = vector.extract_strided_slice %18 {offsets = [0, 32], sizes = [2, 32], strides = [1, 1]} : vector<2x128xf32> to vector<2x32xf32>
    %22 = vector.extract_strided_slice %19 {offsets = [0, 64], sizes = [2, 32], strides = [1, 1]} : vector<2x128xf32> to vector<2x32xf32>
    %23 = vector.extract_strided_slice %18 {offsets = [0, 96], sizes = [2, 32], strides = [1, 1]} : vector<2x128xf32> to vector<2x32xf32>
    %24 = arith.mulf %21, %8 : vector<2x32xf32>
    %25 = arith.mulf %20, %22 : vector<2x32xf32>
    %26 = arith.addf %24, %25 : vector<2x32xf32>
    %27 = math.tanh %26 : vector<2x32xf32>
    %28 = arith.mulf %23, %27 : vector<2x32xf32>
    %cst_13 = arith.constant dense<0.000000e+00> : vector<2x128xf32>
    %29 = tpu.matmul %28, %1, %cst_13 {dimension_numbers = #tpu.dot_dimension_numbers<[1], [1], [0], [0], [0, 0, 1, 0], [], []>} : vector<2x32xf32>, vector<128x32xf32>, vector<2x128xf32> -> vector<2x128xf32>
    %30 = vector.extract_strided_slice %6 {offsets = [2, 0], sizes = [2, 128], strides = [1, 1]} : vector<16x128xf32> to vector<2x128xf32>
    %31 = arith.addf %30, %29 : vector<2x128xf32>
    %cst_14 = arith.constant 5.000000e-01 : f32
    %32 = vector.broadcast %cst_14 : f32 to vector<2x128xf32>
    %33 = arith.mulf %32, %31 : vector<2x128xf32>
    %34 = math.tanh %33 : vector<2x128xf32>
    %cst_15 = arith.constant 1.000000e+00 : f32
    %35 = vector.broadcast %cst_15 : f32 to vector<2x128xf32>
    %36 = arith.addf %34, %35 : vector<2x128xf32>
    %cst_16 = arith.constant 5.000000e-01 : f32
    %37 = vector.broadcast %cst_16 : f32 to vector<2x128xf32>
    %38 = arith.mulf %37, %36 : vector<2x128xf32>
    %39 = math.tanh %31 : vector<2x128xf32>
    %40 = vector.extract_strided_slice %38 {offsets = [0, 0], sizes = [2, 32], strides = [1, 1]} : vector<2x128xf32> to vector<2x32xf32>
    %41 = vector.extract_strided_slice %38 {offsets = [0, 32], sizes = [2, 32], strides = [1, 1]} : vector<2x128xf32> to vector<2x32xf32>
    %42 = vector.extract_strided_slice %39 {offsets = [0, 64], sizes = [2, 32], strides = [1, 1]} : vector<2x128xf32> to vector<2x32xf32>
    %43 = vector.extract_strided_slice %38 {offsets = [0, 96], sizes = [2, 32], strides = [1, 1]} : vector<2x128xf32> to vector<2x32xf32>
    %44 = arith.mulf %41, %26 : vector<2x32xf32>
    %45 = arith.mulf %40, %42 : vector<2x32xf32>
    %46 = arith.addf %44, %45 : vector<2x32xf32>
    %47 = math.tanh %46 : vector<2x32xf32>
    %48 = arith.mulf %43, %47 : vector<2x32xf32>
    %cst_17 = arith.constant dense<0.000000e+00> : vector<2x128xf32>
    %49 = tpu.matmul %48, %1, %cst_17 {dimension_numbers = #tpu.dot_dimension_numbers<[1], [1], [0], [0], [0, 0, 1, 0], [], []>} : vector<2x32xf32>, vector<128x32xf32>, vector<2x128xf32> -> vector<2x128xf32>
    %50 = vector.extract_strided_slice %6 {offsets = [4, 0], sizes = [2, 128], strides = [1, 1]} : vector<16x128xf32> to vector<2x128xf32>
    %51 = arith.addf %50, %49 : vector<2x128xf32>
    %cst_18 = arith.constant 5.000000e-01 : f32
    %52 = vector.broadcast %cst_18 : f32 to vector<2x128xf32>
    %53 = arith.mulf %52, %51 : vector<2x128xf32>
    %54 = math.tanh %53 : vector<2x128xf32>
    %cst_19 = arith.constant 1.000000e+00 : f32
    %55 = vector.broadcast %cst_19 : f32 to vector<2x128xf32>
    %56 = arith.addf %54, %55 : vector<2x128xf32>
    %cst_20 = arith.constant 5.000000e-01 : f32
    %57 = vector.broadcast %cst_20 : f32 to vector<2x128xf32>
    %58 = arith.mulf %57, %56 : vector<2x128xf32>
    %59 = math.tanh %51 : vector<2x128xf32>
    %60 = vector.extract_strided_slice %58 {offsets = [0, 0], sizes = [2, 32], strides = [1, 1]} : vector<2x128xf32> to vector<2x32xf32>
    %61 = vector.extract_strided_slice %58 {offsets = [0, 32], sizes = [2, 32], strides = [1, 1]} : vector<2x128xf32> to vector<2x32xf32>
    %62 = vector.extract_strided_slice %59 {offsets = [0, 64], sizes = [2, 32], strides = [1, 1]} : vector<2x128xf32> to vector<2x32xf32>
    %63 = vector.extract_strided_slice %58 {offsets = [0, 96], sizes = [2, 32], strides = [1, 1]} : vector<2x128xf32> to vector<2x32xf32>
    %64 = arith.mulf %61, %46 : vector<2x32xf32>
    %65 = arith.mulf %60, %62 : vector<2x32xf32>
    %66 = arith.addf %64, %65 : vector<2x32xf32>
    %67 = math.tanh %66 : vector<2x32xf32>
    %68 = arith.mulf %63, %67 : vector<2x32xf32>
    %cst_21 = arith.constant dense<0.000000e+00> : vector<2x128xf32>
    %69 = tpu.matmul %68, %1, %cst_21 {dimension_numbers = #tpu.dot_dimension_numbers<[1], [1], [0], [0], [0, 0, 1, 0], [], []>} : vector<2x32xf32>, vector<128x32xf32>, vector<2x128xf32> -> vector<2x128xf32>
    %70 = vector.extract_strided_slice %6 {offsets = [6, 0], sizes = [2, 128], strides = [1, 1]} : vector<16x128xf32> to vector<2x128xf32>
    %71 = arith.addf %70, %69 : vector<2x128xf32>
    %cst_22 = arith.constant 5.000000e-01 : f32
    %72 = vector.broadcast %cst_22 : f32 to vector<2x128xf32>
    %73 = arith.mulf %72, %71 : vector<2x128xf32>
    %74 = math.tanh %73 : vector<2x128xf32>
    %cst_23 = arith.constant 1.000000e+00 : f32
    %75 = vector.broadcast %cst_23 : f32 to vector<2x128xf32>
    %76 = arith.addf %74, %75 : vector<2x128xf32>
    %cst_24 = arith.constant 5.000000e-01 : f32
    %77 = vector.broadcast %cst_24 : f32 to vector<2x128xf32>
    %78 = arith.mulf %77, %76 : vector<2x128xf32>
    %79 = math.tanh %71 : vector<2x128xf32>
    %80 = vector.extract_strided_slice %78 {offsets = [0, 0], sizes = [2, 32], strides = [1, 1]} : vector<2x128xf32> to vector<2x32xf32>
    %81 = vector.extract_strided_slice %78 {offsets = [0, 32], sizes = [2, 32], strides = [1, 1]} : vector<2x128xf32> to vector<2x32xf32>
    %82 = vector.extract_strided_slice %79 {offsets = [0, 64], sizes = [2, 32], strides = [1, 1]} : vector<2x128xf32> to vector<2x32xf32>
    %83 = vector.extract_strided_slice %78 {offsets = [0, 96], sizes = [2, 32], strides = [1, 1]} : vector<2x128xf32> to vector<2x32xf32>
    %84 = arith.mulf %81, %66 : vector<2x32xf32>
    %85 = arith.mulf %80, %82 : vector<2x32xf32>
    %86 = arith.addf %84, %85 : vector<2x32xf32>
    %87 = math.tanh %86 : vector<2x32xf32>
    %88 = arith.mulf %83, %87 : vector<2x32xf32>
    %cst_25 = arith.constant dense<0.000000e+00> : vector<2x128xf32>
    %89 = tpu.matmul %88, %1, %cst_25 {dimension_numbers = #tpu.dot_dimension_numbers<[1], [1], [0], [0], [0, 0, 1, 0], [], []>} : vector<2x32xf32>, vector<128x32xf32>, vector<2x128xf32> -> vector<2x128xf32>
    %90 = vector.extract_strided_slice %6 {offsets = [8, 0], sizes = [2, 128], strides = [1, 1]} : vector<16x128xf32> to vector<2x128xf32>
    %91 = arith.addf %90, %89 : vector<2x128xf32>
    %cst_26 = arith.constant 5.000000e-01 : f32
    %92 = vector.broadcast %cst_26 : f32 to vector<2x128xf32>
    %93 = arith.mulf %92, %91 : vector<2x128xf32>
    %94 = math.tanh %93 : vector<2x128xf32>
    %cst_27 = arith.constant 1.000000e+00 : f32
    %95 = vector.broadcast %cst_27 : f32 to vector<2x128xf32>
    %96 = arith.addf %94, %95 : vector<2x128xf32>
    %cst_28 = arith.constant 5.000000e-01 : f32
    %97 = vector.broadcast %cst_28 : f32 to vector<2x128xf32>
    %98 = arith.mulf %97, %96 : vector<2x128xf32>
    %99 = math.tanh %91 : vector<2x128xf32>
    %100 = vector.extract_strided_slice %98 {offsets = [0, 0], sizes = [2, 32], strides = [1, 1]} : vector<2x128xf32> to vector<2x32xf32>
    %101 = vector.extract_strided_slice %98 {offsets = [0, 32], sizes = [2, 32], strides = [1, 1]} : vector<2x128xf32> to vector<2x32xf32>
    %102 = vector.extract_strided_slice %99 {offsets = [0, 64], sizes = [2, 32], strides = [1, 1]} : vector<2x128xf32> to vector<2x32xf32>
    %103 = vector.extract_strided_slice %98 {offsets = [0, 96], sizes = [2, 32], strides = [1, 1]} : vector<2x128xf32> to vector<2x32xf32>
    %104 = arith.mulf %101, %86 : vector<2x32xf32>
    %105 = arith.mulf %100, %102 : vector<2x32xf32>
    %106 = arith.addf %104, %105 : vector<2x32xf32>
    %107 = math.tanh %106 : vector<2x32xf32>
    %108 = arith.mulf %103, %107 : vector<2x32xf32>
    %cst_29 = arith.constant dense<0.000000e+00> : vector<2x128xf32>
    %109 = tpu.matmul %108, %1, %cst_29 {dimension_numbers = #tpu.dot_dimension_numbers<[1], [1], [0], [0], [0, 0, 1, 0], [], []>} : vector<2x32xf32>, vector<128x32xf32>, vector<2x128xf32> -> vector<2x128xf32>
    %110 = vector.extract_strided_slice %6 {offsets = [10, 0], sizes = [2, 128], strides = [1, 1]} : vector<16x128xf32> to vector<2x128xf32>
    %111 = arith.addf %110, %109 : vector<2x128xf32>
    %cst_30 = arith.constant 5.000000e-01 : f32
    %112 = vector.broadcast %cst_30 : f32 to vector<2x128xf32>
    %113 = arith.mulf %112, %111 : vector<2x128xf32>
    %114 = math.tanh %113 : vector<2x128xf32>
    %cst_31 = arith.constant 1.000000e+00 : f32
    %115 = vector.broadcast %cst_31 : f32 to vector<2x128xf32>
    %116 = arith.addf %114, %115 : vector<2x128xf32>
    %cst_32 = arith.constant 5.000000e-01 : f32
    %117 = vector.broadcast %cst_32 : f32 to vector<2x128xf32>
    %118 = arith.mulf %117, %116 : vector<2x128xf32>
    %119 = math.tanh %111 : vector<2x128xf32>
    %120 = vector.extract_strided_slice %118 {offsets = [0, 0], sizes = [2, 32], strides = [1, 1]} : vector<2x128xf32> to vector<2x32xf32>
    %121 = vector.extract_strided_slice %118 {offsets = [0, 32], sizes = [2, 32], strides = [1, 1]} : vector<2x128xf32> to vector<2x32xf32>
    %122 = vector.extract_strided_slice %119 {offsets = [0, 64], sizes = [2, 32], strides = [1, 1]} : vector<2x128xf32> to vector<2x32xf32>
    %123 = vector.extract_strided_slice %118 {offsets = [0, 96], sizes = [2, 32], strides = [1, 1]} : vector<2x128xf32> to vector<2x32xf32>
    %124 = arith.mulf %121, %106 : vector<2x32xf32>
    %125 = arith.mulf %120, %122 : vector<2x32xf32>
    %126 = arith.addf %124, %125 : vector<2x32xf32>
    %127 = math.tanh %126 : vector<2x32xf32>
    %128 = arith.mulf %123, %127 : vector<2x32xf32>
    %cst_33 = arith.constant dense<0.000000e+00> : vector<2x128xf32>
    %129 = tpu.matmul %128, %1, %cst_33 {dimension_numbers = #tpu.dot_dimension_numbers<[1], [1], [0], [0], [0, 0, 1, 0], [], []>} : vector<2x32xf32>, vector<128x32xf32>, vector<2x128xf32> -> vector<2x128xf32>
    %130 = vector.extract_strided_slice %6 {offsets = [12, 0], sizes = [2, 128], strides = [1, 1]} : vector<16x128xf32> to vector<2x128xf32>
    %131 = arith.addf %130, %129 : vector<2x128xf32>
    %cst_34 = arith.constant 5.000000e-01 : f32
    %132 = vector.broadcast %cst_34 : f32 to vector<2x128xf32>
    %133 = arith.mulf %132, %131 : vector<2x128xf32>
    %134 = math.tanh %133 : vector<2x128xf32>
    %cst_35 = arith.constant 1.000000e+00 : f32
    %135 = vector.broadcast %cst_35 : f32 to vector<2x128xf32>
    %136 = arith.addf %134, %135 : vector<2x128xf32>
    %cst_36 = arith.constant 5.000000e-01 : f32
    %137 = vector.broadcast %cst_36 : f32 to vector<2x128xf32>
    %138 = arith.mulf %137, %136 : vector<2x128xf32>
    %139 = math.tanh %131 : vector<2x128xf32>
    %140 = vector.extract_strided_slice %138 {offsets = [0, 0], sizes = [2, 32], strides = [1, 1]} : vector<2x128xf32> to vector<2x32xf32>
    %141 = vector.extract_strided_slice %138 {offsets = [0, 32], sizes = [2, 32], strides = [1, 1]} : vector<2x128xf32> to vector<2x32xf32>
    %142 = vector.extract_strided_slice %139 {offsets = [0, 64], sizes = [2, 32], strides = [1, 1]} : vector<2x128xf32> to vector<2x32xf32>
    %143 = vector.extract_strided_slice %138 {offsets = [0, 96], sizes = [2, 32], strides = [1, 1]} : vector<2x128xf32> to vector<2x32xf32>
    %144 = arith.mulf %141, %126 : vector<2x32xf32>
    %145 = arith.mulf %140, %142 : vector<2x32xf32>
    %146 = arith.addf %144, %145 : vector<2x32xf32>
    %147 = math.tanh %146 : vector<2x32xf32>
    %148 = arith.mulf %143, %147 : vector<2x32xf32>
    %cst_37 = arith.constant dense<0.000000e+00> : vector<2x128xf32>
    %149 = tpu.matmul %148, %1, %cst_37 {dimension_numbers = #tpu.dot_dimension_numbers<[1], [1], [0], [0], [0, 0, 1, 0], [], []>} : vector<2x32xf32>, vector<128x32xf32>, vector<2x128xf32> -> vector<2x128xf32>
    %150 = vector.extract_strided_slice %6 {offsets = [14, 0], sizes = [2, 128], strides = [1, 1]} : vector<16x128xf32> to vector<2x128xf32>
    %151 = arith.addf %150, %149 : vector<2x128xf32>
    %cst_38 = arith.constant 5.000000e-01 : f32
    %152 = vector.broadcast %cst_38 : f32 to vector<2x128xf32>
    %153 = arith.mulf %152, %151 : vector<2x128xf32>
    %154 = math.tanh %153 : vector<2x128xf32>
    %cst_39 = arith.constant 1.000000e+00 : f32
    %155 = vector.broadcast %cst_39 : f32 to vector<2x128xf32>
    %156 = arith.addf %154, %155 : vector<2x128xf32>
    %cst_40 = arith.constant 5.000000e-01 : f32
    %157 = vector.broadcast %cst_40 : f32 to vector<2x128xf32>
    %158 = arith.mulf %157, %156 : vector<2x128xf32>
    %159 = math.tanh %151 : vector<2x128xf32>
    %160 = vector.extract_strided_slice %158 {offsets = [0, 0], sizes = [2, 32], strides = [1, 1]} : vector<2x128xf32> to vector<2x32xf32>
    %161 = vector.extract_strided_slice %158 {offsets = [0, 32], sizes = [2, 32], strides = [1, 1]} : vector<2x128xf32> to vector<2x32xf32>
    %162 = vector.extract_strided_slice %159 {offsets = [0, 64], sizes = [2, 32], strides = [1, 1]} : vector<2x128xf32> to vector<2x32xf32>
    %163 = vector.extract_strided_slice %158 {offsets = [0, 96], sizes = [2, 32], strides = [1, 1]} : vector<2x128xf32> to vector<2x32xf32>
    %164 = arith.mulf %161, %146 : vector<2x32xf32>
    %165 = arith.mulf %160, %162 : vector<2x32xf32>
    %166 = arith.addf %164, %165 : vector<2x32xf32>
    %167 = math.tanh %166 : vector<2x32xf32>
    %168 = arith.mulf %163, %167 : vector<2x32xf32>
    %c0_41 = arith.constant 0 : index
    %c0_42 = arith.constant 0 : index
    %169 = vector.load %arg4[%c0_41, %c0_42] : memref<2x32xf32, #tpu.memory_space<vmem>>, vector<2x32xf32>
    tpu.vector_store %arg4[%c0_41, %c0_42], %168 {strides = array<i32>} : memref<2x32xf32, #tpu.memory_space<vmem>>, vector<2x32xf32>,
    return
  }
}

</mosaic_0001>

<llo_original>
// kernel: sensor_encoder_forward.1
$region0: #{sensor_encoder_forward.1}
  #allocation0 [shape = 'u32[]', space=smem, size = 0x4, offset = 0x4, fixed_abs, tag = 'smem constant byte address 0x4 - core index']
  #allocation1 [shape = 'u32[144,128]{1,0:T(1,128)}', space=vmem, size = 0x12000, scoped, tag = 'internal scratch']
  %s0 = inlined_call_operand.vmem [shape: f32[16,4], index: 0, kind: input, shape index: {}]
  %s1 = inlined_call_operand.vmem [shape: f32[128,4], index: 1, kind: input, shape index: {}]
  %s2 = inlined_call_operand.vmem [shape: f32[128,32], index: 2, kind: input, shape index: {}]
  %s3 = inlined_call_operand.vmem [shape: f32[1,128], index: 3, kind: input, shape index: {}]
  %s4 = inlined_call_operand.hbm [shape: f32[2,32], index: 4, kind: output, shape index: {}]
  %s5 = sld [smem:[#allocation0]]
  $region26: #{sensor_encoder_forward.1} parent=0
    _
  %s7 = ssub.s32 1, %s5
  %s8 = scalar_select 0, %s7, %s5
  $region1: #{sensor_encoder_forward.1} parent=0
    #allocation2 [shape = 'u8[1024]{0}', space=vmem, size = 0x400, scoped, tag = 'output window, operand 0, single buffered']
    #allocation3 [shape = 's32[1]{0}', space=sflag, size = 0x4, scoped, tag = 'scoped memory for sensor_encoder_forward.1']
    %9 = vsyncpa [#allocation3], 0
    // Predicated region
    $region2: #{sensor_encoder_forward.1} parent=1 // pred_check
      _
    $region3: #{sensor_encoder_forward.1} parent=1 // pred_check_branch
      %11 = sbr.rel (0) target = $region5
    $region4: #{sensor_encoder_forward.1} parent=1 // pred_region
      _
    $region5: #{sensor_encoder_forward.1} parent=1 // pred_fallthru
      _
    // Predicated region
    $region6: #{sensor_encoder_forward.1} parent=1 // pred_check
      _
    $region7: #{sensor_encoder_forward.1} parent=1 // pred_check_branch
      %13 = sbr.rel (0) target = $region9
    $region8: #{sensor_encoder_forward.1} parent=1 // pred_region
      _
    $region9: #{sensor_encoder_forward.1} parent=1 // pred_fallthru
      _
    // Predicated region
    $region10: #{sensor_encoder_forward.1} parent=1 // pred_check
      _
    $region11: #{sensor_encoder_forward.1} parent=1 // pred_check_branch
      %15 = sbr.rel (0) target = $region13
    $region12: #{sensor_encoder_forward.1} parent=1 // pred_region
      _
    $region13: #{sensor_encoder_forward.1} parent=1 // pred_fallthru
      _
    // Predicated region
    $region14: #{sensor_encoder_forward.1} parent=1 // pred_check
      _
    $region15: #{sensor_encoder_forward.1} parent=1 // pred_check_branch
      %17 = sbr.rel (0) target = $region17
    $region16: #{sensor_encoder_forward.1} parent=1 // pred_region
      _
    $region17: #{sensor_encoder_forward.1} parent=1 // pred_fallthru
      _
    %v18 = vld [vmem:[%s1] sm:$0xff]
    %v19 = vld [vmem:[%s1 + $0x8] sm:$0xff]
    %v20 = vld [vmem:[%s1 + $0x10] sm:$0xff]
    %v21 = vld [vmem:[%s1 + $0x18] sm:$0xff]
    %v22 = vld [vmem:[%s1 + $0x20] sm:$0xff]
    %v23 = vld [vmem:[%s1 + $0x28] sm:$0xff]
    %v24 = vld [vmem:[%s1 + $0x30] sm:$0xff]
    %v25 = vld [vmem:[%s1 + $0x38] sm:$0xff]
    %v26 = vld [vmem:[%s1 + $0x40] sm:$0xff]
    %v27 = vld [vmem:[%s1 + $0x48] sm:$0xff]
    %v28 = vld [vmem:[%s1 + $0x50] sm:$0xff]
    %v29 = vld [vmem:[%s1 + $0x58] sm:$0xff]
    %v30 = vld [vmem:[%s1 + $0x60] sm:$0xff]
    %v31 = vld [vmem:[%s1 + $0x68] sm:$0xff]
    %v32 = vld [vmem:[%s1 + $0x70] sm:$0xff]
    %v33 = vld [vmem:[%s1 + $0x78] sm:$0xff]
    %v34 = vld [vmem:[%s2] sm:$0xff]
    %v35 = vld [vmem:[%s2 + $0x8] sm:$0xff]
    %v36 = vld [vmem:[%s2 + $0x10] sm:$0xff]
    %v37 = vld [vmem:[%s2 + $0x18] sm:$0xff]
    %v38 = vld [vmem:[%s2 + $0x20] sm:$0xff]
    %v39 = vld [vmem:[%s2 + $0x28] sm:$0xff]
    %v40 = vld [vmem:[%s2 + $0x30] sm:$0xff]
    %v41 = vld [vmem:[%s2 + $0x38] sm:$0xff]
    %v42 = vld [vmem:[%s2 + $0x40] sm:$0xff]
    %v43 = vld [vmem:[%s2 + $0x48] sm:$0xff]
    %v44 = vld [vmem:[%s2 + $0x50] sm:$0xff]
    %v45 = vld [vmem:[%s2 + $0x58] sm:$0xff]
    %v46 = vld [vmem:[%s2 + $0x60] sm:$0xff]
    %v47 = vld [vmem:[%s2 + $0x68] sm:$0xff]
    %v48 = vld [vmem:[%s2 + $0x70] sm:$0xff]
    %v49 = vld [vmem:[%s2 + $0x78] sm:$0xff]
    %v50 = vld [vmem:[%s3] sm:$0x1]
    %v51 = vld [vmem:[%s0] sm:$0xff]
    %v52 = vld [vmem:[%s0 + $0x8] sm:$0xff]
    %v54 = vlaneseq
    %v55 = vshrl.u32 %v54, 7
    %v56 = vsub.s32 0, %v55
    %v57 = vrot.slane %v50, %v56
    %vm59 = vcmask 31744
    %v61 = vsel %vm59, %v51, 0
    %v64 = vsel %vm59, %v52, 0
    %v67 = vsel %vm59, %v18, 0
    %v70 = vsel %vm59, %v19, 0
    %v73 = vsel %vm59, %v20, 0
    %v76 = vsel %vm59, %v21, 0
    %v79 = vsel %vm59, %v22, 0
    %v82 = vsel %vm59, %v23, 0
    %v85 = vsel %vm59, %v24, 0
    %v88 = vsel %vm59, %v25, 0
    %v91 = vsel %vm59, %v26, 0
    %v94 = vsel %vm59, %v27, 0
    %v97 = vsel %vm59, %v28, 0
    %v100 = vsel %vm59, %v29, 0
    %v103 = vsel %vm59, %v30, 0
    %v106 = vsel %vm59, %v31, 0
    %v109 = vsel %vm59, %v32, 0
    %v112 = vsel %vm59, %v33, 0
    %114 = vmatprep.subr.mxu0 0.0
    %115 = vmatpush1.xpose.msra.mxu0 %v112
    %116 = vmatprep.subr.mxu0 0.0
    %117 = vmatpush1.xpose.msra.mxu0 %v109
    %118 = vmatprep.subr.mxu0 0.0
    %119 = vmatpush1.xpose.msra.mxu0 %v106
    %120 = vmatprep.subr.mxu0 0.0
    %121 = vmatpush1.xpose.msra.mxu0 %v103
    %122 = vmatprep.subr.mxu0 0.0
    %123 = vmatpush1.xpose.msra.mxu0 %v100
    %124 = vmatprep.subr.mxu0 0.0
    %125 = vmatpush1.xpose.msra.mxu0 %v97
    %126 = vmatprep.subr.mxu0 0.0
    %127 = vmatpush1.xpose.msra.mxu0 %v94
    %128 = vmatprep.subr.mxu0 0.0
    %129 = vmatpush1.xpose.msra.mxu0 %v91
    %130 = vmatprep.subr.mxu0 0.0
    %131 = vmatpush1.xpose.msra.mxu0 %v88
    %132 = vmatprep.subr.mxu0 0.0
    %133 = vmatpush1.xpose.msra.mxu0 %v85
    %134 = vmatprep.subr.mxu0 0.0
    %135 = vmatpush1.xpose.msra.mxu0 %v82
    %136 = vmatprep.subr.mxu0 0.0
    %137 = vmatpush1.xpose.msra.mxu0 %v79
    %138 = vmatprep.subr.mxu0 0.0
    %139 = vmatpush1.xpose.msra.mxu0 %v76
    %140 = vmatprep.subr.mxu0 0.0
    %141 = vmatpush1.xpose.msra.mxu0 %v73
    %142 = vmatprep.subr.mxu0 0.0
    %143 = vmatpush1.xpose.msra.mxu0 %v70
    %144 = vmatprep.subr.mxu0 0.0
    %145 = vmatpush1.xpose.msra.mxu0 %v67
    %146 = vmatprep.subr.mxu0 0.0
    %147 = vmatpush2.xpose.msra.mxu0 0.0
    %148 = vmatprep.subr.mxu0 0.0
    %149 = vmatpush2.xpose.msra.mxu0 0.0
    %150 = vmatprep.subr.mxu0 0.0
    %151 = vmatpush2.xpose.msra.mxu0 0.0
    %152 = vmatprep.subr.mxu0 0.0
    %153 = vmatpush2.xpose.msra.mxu0 0.0
    %154 = vmatprep.subr.mxu0 0.0
    %155 = vmatpush2.xpose.msra.mxu0 0.0
    %156 = vmatprep.subr.mxu0 0.0
    %157 = vmatpush2.xpose.msra.mxu0 0.0
    %158 = vmatprep.subr.mxu0 0.0
    %159 = vmatpush2.xpose.msra.mxu0 0.0
    %160 = vmatprep.subr.mxu0 0.0
    %161 = vmatpush2.xpose.msra.mxu0 0.0
    %162 = vmatprep.subr.mxu0 0.0
    %163 = vmatpush2.xpose.msra.mxu0 0.0
    %164 = vmatprep.subr.mxu0 0.0
    %165 = vmatpush2.xpose.msra.mxu0 0.0
    %166 = vmatprep.subr.mxu0 0.0
    %167 = vmatpush2.xpose.msra.mxu0 0.0
    %168 = vmatprep.subr.mxu0 0.0
    %169 = vmatpush2.xpose.msra.mxu0 0.0
    %170 = vmatprep.subr.mxu0 0.0
    %171 = vmatpush2.xpose.msra.mxu0 0.0
    %172 = vmatprep.subr.mxu0 0.0
    %173 = vmatpush2.xpose.msra.mxu0 0.0
    %174 = vmatprep.subr.mxu0 0.0
    %175 = vmatpush2.xpose.msra.mxu0 0.0
    %176 = vmatprep.subr.mxu0 0.0
    %177 = vmatpush2.xpose.msra.mxu0 0.0
    %178 = vmatprep.mubr.f32.mxu0 0.0
    %179 = vmatmul.mubr.f32.gmra.mxu0 %v61
    %v180 = vpop.f32.mrf.mxu0
    %v181 = vadd.f32 %v57, %v180
    %v182 = vpop.f32.mrf.mxu0
    %183 = vmatprep.mubr.f32.mxu0 0.0
    %184 = vmatmul.mubr.f32.gmra.mxu0 %v64
    %v185 = vpop.f32.mrf.mxu0
    %v186 = vadd.f32 %v57, %v185
    %v187 = vpop.f32.mrf.mxu0
    %188 = vdwg.mxu0
    %vm189 = vcmask 261120
    %v191 = vsel %vm189, 0.0, 0
    %v194 = vsel %vm189, %v34, 0
    %v197 = vsel %vm189, %v35, 0
    %v200 = vsel %vm189, %v36, 0
    %v203 = vsel %vm189, %v37, 0
    %v206 = vsel %vm189, %v38, 0
    %v209 = vsel %vm189, %v39, 0
    %v212 = vsel %vm189, %v40, 0
    %v215 = vsel %vm189, %v41, 0
    %v218 = vsel %vm189, %v42, 0
    %v221 = vsel %vm189, %v43, 0
    %v224 = vsel %vm189, %v44, 0
    %v227 = vsel %vm189, %v45, 0
    %v230 = vsel %vm189, %v46, 0
    %v233 = vsel %vm189, %v47, 0
    %v236 = vsel %vm189, %v48, 0
    %v239 = vsel %vm189, %v49, 0
    %241 = vmatprep.subr.mxu0 0.0
    %242 = vmatpush1.xpose.msra.mxu0 %v239
    %243 = vmatprep.subr.mxu0 0.0
    %244 = vmatpush1.xpose.msra.mxu0 %v236
    %245 = vmatprep.subr.mxu0 0.0
    %246 = vmatpush1.xpose.msra.mxu0 %v233
    %247 = vmatprep.subr.mxu0 0.0
    %248 = vmatpush1.xpose.msra.mxu0 %v230
    %249 = vmatprep.subr.mxu0 0.0
    %250 = vmatpush1.xpose.msra.mxu0 %v227
    %251 = vmatprep.subr.mxu0 0.0
    %252 = vmatpush1.xpose.msra.mxu0 %v224
    %253 = vmatprep.subr.mxu0 0.0
    %254 = vmatpush1.xpose.msra.mxu0 %v221
    %255 = vmatprep.subr.mxu0 0.0
    %256 = vmatpush1.xpose.msra.mxu0 %v218
    %257 = vmatprep.subr.mxu0 0.0
    %258 = vmatpush1.xpose.msra.mxu0 %v215
    %259 = vmatprep.subr.mxu0 0.0
    %260 = vmatpush1.xpose.msra.mxu0 %v212
    %261 = vmatprep.subr.mxu0 0.0
    %262 = vmatpush1.xpose.msra.mxu0 %v209
    %263 = vmatprep.subr.mxu0 0.0
    %264 = vmatpush1.xpose.msra.mxu0 %v206
    %265 = vmatprep.subr.mxu0 0.0
    %266 = vmatpush1.xpose.msra.mxu0 %v203
    %267 = vmatprep.subr.mxu0 0.0
    %268 = vmatpush1.xpose.msra.mxu0 %v200
    %269 = vmatprep.subr.mxu0 0.0
    %270 = vmatpush1.xpose.msra.mxu0 %v197
    %271 = vmatprep.subr.mxu0 0.0
    %272 = vmatpush1.xpose.msra.mxu0 %v194
    %273 = vmatprep.subr.mxu0 0.0
    %274 = vmatpush2.xpose.msra.mxu0 0.0
    %275 = vmatprep.subr.mxu0 0.0
    %276 = vmatpush2.xpose.msra.mxu0 0.0
    %277 = vmatprep.subr.mxu0 0.0
    %278 = vmatpush2.xpose.msra.mxu0 0.0
    %279 = vmatprep.subr.mxu0 0.0
    %280 = vmatpush2.xpose.msra.mxu0 0.0
    %281 = vmatprep.subr.mxu0 0.0
    %282 = vmatpush2.xpose.msra.mxu0 0.0
    %283 = vmatprep.subr.mxu0 0.0
    %284 = vmatpush2.xpose.msra.mxu0 0.0
    %285 = vmatprep.subr.mxu0 0.0
    %286 = vmatpush2.xpose.msra.mxu0 0.0
    %287 = vmatprep.subr.mxu0 0.0
    %288 = vmatpush2.xpose.msra.mxu0 0.0
    %289 = vmatprep.subr.mxu0 0.0
    %290 = vmatpush2.xpose.msra.mxu0 0.0
    %291 = vmatprep.subr.mxu0 0.0
    %292 = vmatpush2.xpose.msra.mxu0 0.0
    %293 = vmatprep.subr.mxu0 0.0
    %294 = vmatpush2.xpose.msra.mxu0 0.0
    %295 = vmatprep.subr.mxu0 0.0
    %296 = vmatpush2.xpose.msra.mxu0 0.0
    %297 = vmatprep.subr.mxu0 0.0
    %298 = vmatpush2.xpose.msra.mxu0 0.0
    %299 = vmatprep.subr.mxu0 0.0
    %300 = vmatpush2.xpose.msra.mxu0 0.0
    %301 = vmatprep.subr.mxu0 0.0
    %302 = vmatpush2.xpose.msra.mxu0 0.0
    %303 = vmatprep.subr.mxu0 0.0
    %304 = vmatpush2.xpose.msra.mxu0 0.0
    %305 = vmatprep.mubr.f32.mxu0 0.0
    %306 = vmatmul.mubr.f32.gmra.mxu0 %v191
    %v307 = vpop.f32.mrf.mxu0
    %v308 = vadd.f32 0.0, %v307
    %v309 = vpop.f32.mrf.mxu0
    %310 = vdwg.mxu0
    %v311 = vadd.f32 %v181, %v308
    %v312 = vmul.f32 %v311, 0.5
    %v313 = vtanh.pop %v312
    %v314 = vadd.f32 %v313, 1.0
    %v315 = vmul.f32 %v314, 0.5
    %v316 = vtanh.pop %v311
    %v317 = vmul.f32 %v315, 0.0
    %319 = vrot.lane.b32.xlu0 %v316, 64
    %v320 = vpop.permute.xlu0 %319
    %v322 = vmul.f32 %v315, %v320
    %324 = vrot.lane.b32.xlu0 %v322, 32
    %v325 = vpop.permute.xlu0 %324
    %v327 = vadd.f32 %v317, %v325
    %v328 = vtanh.pop %v327
    %330 = vrot.lane.b32.xlu0 %v328, 64
    %v331 = vpop.permute.xlu0 %330
    %v333 = vmul.f32 %v315, %v331
    %335 = vrot.lane.b32.xlu0 %v333, 32
    %v336 = vpop.permute.xlu0 %335
    %v337 = vsel %vm189, %v336, 0
    %339 = vmatprep.subr.mxu0 0.0
    %340 = vmatpush1.xpose.msra.mxu0 %v239
    %341 = vmatprep.subr.mxu0 0.0
    %342 = vmatpush1.xpose.msra.mxu0 %v236
    %343 = vmatprep.subr.mxu0 0.0
    %344 = vmatpush1.xpose.msra.mxu0 %v233
    %345 = vmatprep.subr.mxu0 0.0
    %346 = vmatpush1.xpose.msra.mxu0 %v230
    %347 = vmatprep.subr.mxu0 0.0
    %348 = vmatpush1.xpose.msra.mxu0 %v227
    %349 = vmatprep.subr.mxu0 0.0
    %350 = vmatpush1.xpose.msra.mxu0 %v224
    %351 = vmatprep.subr.mxu0 0.0
    %352 = vmatpush1.xpose.msra.mxu0 %v221
    %353 = vmatprep.subr.mxu0 0.0
    %354 = vmatpush1.xpose.msra.mxu0 %v218
    %355 = vmatprep.subr.mxu0 0.0
    %356 = vmatpush1.xpose.msra.mxu0 %v215
    %357 = vmatprep.subr.mxu0 0.0
    %358 = vmatpush1.xpose.msra.mxu0 %v212
    %359 = vmatprep.subr.mxu0 0.0
    %360 = vmatpush1.xpose.msra.mxu0 %v209
    %361 = vmatprep.subr.mxu0 0.0
    %362 = vmatpush1.xpose.msra.mxu0 %v206
    %363 = vmatprep.subr.mxu0 0.0
    %364 = vmatpush1.xpose.msra.mxu0 %v203
    %365 = vmatprep.subr.mxu0 0.0
    %366 = vmatpush1.xpose.msra.mxu0 %v200
    %367 = vmatprep.subr.mxu0 0.0
    %368 = vmatpush1.xpose.msra.mxu0 %v197
    %369 = vmatprep.subr.mxu0 0.0
    %370 = vmatpush1.xpose.msra.mxu0 %v194
    %371 = vmatprep.subr.mxu0 0.0
    %372 = vmatpush2.xpose.msra.mxu0 0.0
    %373 = vmatprep.subr.mxu0 0.0
    %374 = vmatpush2.xpose.msra.mxu0 0.0
    %375 = vmatprep.subr.mxu0 0.0
    %376 = vmatpush2.xpose.msra.mxu0 0.0
    %377 = vmatprep.subr.mxu0 0.0
    %378 = vmatpush2.xpose.msra.mxu0 0.0
    %379 = vmatprep.subr.mxu0 0.0
    %380 = vmatpush2.xpose.msra.mxu0 0.0
    %381 = vmatprep.subr.mxu0 0.0
    %382 = vmatpush2.xpose.msra.mxu0 0.0
    %383 = vmatprep.subr.mxu0 0.0
    %384 = vmatpush2.xpose.msra.mxu0 0.0
    %385 = vmatprep.subr.mxu0 0.0
    %386 = vmatpush2.xpose.msra.mxu0 0.0
    %387 = vmatprep.subr.mxu0 0.0
    %388 = vmatpush2.xpose.msra.mxu0 0.0
    %389 = vmatprep.subr.mxu0 0.0
    %390 = vmatpush2.xpose.msra.mxu0 0.0
    %391 = vmatprep.subr.mxu0 0.0
    %392 = vmatpush2.xpose.msra.mxu0 0.0
    %393 = vmatprep.subr.mxu0 0.0
    %394 = vmatpush2.xpose.msra.mxu0 0.0
    %395 = vmatprep.subr.mxu0 0.0
    %396 = vmatpush2.xpose.msra.mxu0 0.0
    %397 = vmatprep.subr.mxu0 0.0
    %398 = vmatpush2.xpose.msra.mxu0 0.0
    %399 = vmatprep.subr.mxu0 0.0
    %400 = vmatpush2.xpose.msra.mxu0 0.0
    %401 = vmatprep.subr.mxu0 0.0
    %402 = vmatpush2.xpose.msra.mxu0 0.0
    %403 = vmatprep.mubr.f32.mxu0 0.0
    %404 = vmatmul.mubr.f32.gmra.mxu0 %v337
    %v405 = vpop.f32.mrf.mxu0
    %v406 = vadd.f32 0.0, %v405
    %v407 = vpop.f32.mrf.mxu0
    %408 = vdwg.mxu0
    %v410 = vrot.slane %v406, 6
    %v412 = vadd.f32 %v181, %v410
    %v413 = vmul.f32 %v412, 0.5
    %v414 = vtanh.pop %v413
    %v415 = vadd.f32 %v414, 1.0
    %v416 = vmul.f32 %v415, 0.5
    %v417 = vtanh.pop %v412
    %v419 = vrot.slane %v327, 6
    %v421 = vmul.f32 %v416, %v419
    %423 = vrot.lane.b32.xlu0 %v417, 64
    %v424 = vpop.permute.xlu0 %423
    %v426 = vmul.f32 %v416, %v424
    %428 = vrot.lane.b32.xlu0 %v426, 32
    %v429 = vpop.permute.xlu0 %428
    %v431 = vadd.f32 %v421, %v429
    %v432 = vtanh.pop %v431
    %434 = vrot.lane.b32.xlu0 %v432, 64
    %v435 = vpop.permute.xlu0 %434
    %v437 = vmul.f32 %v416, %v435
    %v439 = vrot.slane %v437, 2
    %440 = vrot.lane.b32.xlu0 %v439, 32
    %v441 = vpop.permute.xlu0 %440
    %v442 = vsel %vm189, %v441, 0
    %444 = vmatprep.subr.mxu0 0.0
    %445 = vmatpush1.xpose.msra.mxu0 %v239
    %446 = vmatprep.subr.mxu0 0.0
    %447 = vmatpush1.xpose.msra.mxu0 %v236
    %448 = vmatprep.subr.mxu0 0.0
    %449 = vmatpush1.xpose.msra.mxu0 %v233
    %450 = vmatprep.subr.mxu0 0.0
    %451 = vmatpush1.xpose.msra.mxu0 %v230
    %452 = vmatprep.subr.mxu0 0.0
    %453 = vmatpush1.xpose.msra.mxu0 %v227
    %454 = vmatprep.subr.mxu0 0.0
    %455 = vmatpush1.xpose.msra.mxu0 %v224
    %456 = vmatprep.subr.mxu0 0.0
    %457 = vmatpush1.xpose.msra.mxu0 %v221
    %458 = vmatprep.subr.mxu0 0.0
    %459 = vmatpush1.xpose.msra.mxu0 %v218
    %460 = vmatprep.subr.mxu0 0.0
    %461 = vmatpush1.xpose.msra.mxu0 %v215
    %462 = vmatprep.subr.mxu0 0.0
    %463 = vmatpush1.xpose.msra.mxu0 %v212
    %464 = vmatprep.subr.mxu0 0.0
    %465 = vmatpush1.xpose.msra.mxu0 %v209
    %466 = vmatprep.subr.mxu0 0.0
    %467 = vmatpush1.xpose.msra.mxu0 %v206
    %468 = vmatprep.subr.mxu0 0.0
    %469 = vmatpush1.xpose.msra.mxu0 %v203
    %470 = vmatprep.subr.mxu0 0.0
    %471 = vmatpush1.xpose.msra.mxu0 %v200
    %472 = vmatprep.subr.mxu0 0.0
    %473 = vmatpush1.xpose.msra.mxu0 %v197
    %474 = vmatprep.subr.mxu0 0.0
    %475 = vmatpush1.xpose.msra.mxu0 %v194
    %476 = vmatprep.subr.mxu0 0.0
    %477 = vmatpush2.xpose.msra.mxu0 0.0
    %478 = vmatprep.subr.mxu0 0.0
    %479 = vmatpush2.xpose.msra.mxu0 0.0
    %480 = vmatprep.subr.mxu0 0.0
    %481 = vmatpush2.xpose.msra.mxu0 0.0
    %482 = vmatprep.subr.mxu0 0.0
    %483 = vmatpush2.xpose.msra.mxu0 0.0
    %484 = vmatprep.subr.mxu0 0.0
    %485 = vmatpush2.xpose.msra.mxu0 0.0
    %486 = vmatprep.subr.mxu0 0.0
    %487 = vmatpush2.xpose.msra.mxu0 0.0
    %488 = vmatprep.subr.mxu0 0.0
    %489 = vmatpush2.xpose.msra.mxu0 0.0
    %490 = vmatprep.subr.mxu0 0.0
    %491 = vmatpush2.xpose.msra.mxu0 0.0
    %492 = vmatprep.subr.mxu0 0.0
    %493 = vmatpush2.xpose.msra.mxu0 0.0
    %494 = vmatprep.subr.mxu0 0.0
    %495 = vmatpush2.xpose.msra.mxu0 0.0
    %496 = vmatprep.subr.mxu0 0.0
    %497 = vmatpush2.xpose.msra.mxu0 0.0
    %498 = vmatprep.subr.mxu0 0.0
    %499 = vmatpush2.xpose.msra.mxu0 0.0
    %500 = vmatprep.subr.mxu0 0.0
    %501 = vmatpush2.xpose.msra.mxu0 0.0
    %502 = vmatprep.subr.mxu0 0.0
    %503 = vmatpush2.xpose.msra.mxu0 0.0
    %504 = vmatprep.subr.mxu0 0.0
    %505 = vmatpush2.xpose.msra.mxu0 0.0
    %506 = vmatprep.subr.mxu0 0.0
    %507 = vmatpush2.xpose.msra.mxu0 0.0
    %508 = vmatprep.mubr.f32.mxu0 0.0
    %509 = vmatmul.mubr.f32.gmra.mxu0 %v442
    %v510 = vpop.f32.mrf.mxu0
    %v511 = vadd.f32 0.0, %v510
    %v512 = vpop.f32.mrf.mxu0
    %513 = vdwg.mxu0
    %v515 = vrot.slane %v511, 4
    %v517 = vadd.f32 %v181, %v515
    %v518 = vmul.f32 %v517, 0.5
    %v519 = vtanh.pop %v518
    %v520 = vadd.f32 %v519, 1.0
    %v521 = vmul.f32 %v520, 0.5
    %v522 = vtanh.pop %v517
    %v524 = vrot.slane %v431, 6
    %v526 = vmul.f32 %v521, %v524
    %528 = vrot.lane.b32.xlu0 %v522, 64
    %v529 = vpop.permute.xlu0 %528
    %v531 = vmul.f32 %v521, %v529
    %533 = vrot.lane.b32.xlu0 %v531, 32
    %v534 = vpop.permute.xlu0 %533
    %v536 = vadd.f32 %v526, %v534
    %v537 = vtanh.pop %v536
    %539 = vrot.lane.b32.xlu0 %v537, 64
    %v540 = vpop.permute.xlu0 %539
    %v542 = vmul.f32 %v521, %v540
    %v544 = vrot.slane %v542, 4
    %545 = vrot.lane.b32.xlu0 %v544, 32
    %v546 = vpop.permute.xlu0 %545
    %v547 = vsel %vm189, %v546, 0
    %549 = vmatprep.subr.mxu0 0.0
    %550 = vmatpush1.xpose.msra.mxu0 %v239
    %551 = vmatprep.subr.mxu0 0.0
    %552 = vmatpush1.xpose.msra.mxu0 %v236
    %553 = vmatprep.subr.mxu0 0.0
    %554 = vmatpush1.xpose.msra.mxu0 %v233
    %555 = vmatprep.subr.mxu0 0.0
    %556 = vmatpush1.xpose.msra.mxu0 %v230
    %557 = vmatprep.subr.mxu0 0.0
    %558 = vmatpush1.xpose.msra.mxu0 %v227
    %559 = vmatprep.subr.mxu0 0.0
    %560 = vmatpush1.xpose.msra.mxu0 %v224
    %561 = vmatprep.subr.mxu0 0.0
    %562 = vmatpush1.xpose.msra.mxu0 %v221
    %563 = vmatprep.subr.mxu0 0.0
    %564 = vmatpush1.xpose.msra.mxu0 %v218
    %565 = vmatprep.subr.mxu0 0.0
    %566 = vmatpush1.xpose.msra.mxu0 %v215
    %567 = vmatprep.subr.mxu0 0.0
    %568 = vmatpush1.xpose.msra.mxu0 %v212
    %569 = vmatprep.subr.mxu0 0.0
    %570 = vmatpush1.xpose.msra.mxu0 %v209
    %571 = vmatprep.subr.mxu0 0.0
    %572 = vmatpush1.xpose.msra.mxu0 %v206
    %573 = vmatprep.subr.mxu0 0.0
    %574 = vmatpush1.xpose.msra.mxu0 %v203
    %575 = vmatprep.subr.mxu0 0.0
    %576 = vmatpush1.xpose.msra.mxu0 %v200
    %577 = vmatprep.subr.mxu0 0.0
    %578 = vmatpush1.xpose.msra.mxu0 %v197
    %579 = vmatprep.subr.mxu0 0.0
    %580 = vmatpush1.xpose.msra.mxu0 %v194
    %581 = vmatprep.subr.mxu0 0.0
    %582 = vmatpush2.xpose.msra.mxu0 0.0
    %583 = vmatprep.subr.mxu0 0.0
    %584 = vmatpush2.xpose.msra.mxu0 0.0
    %585 = vmatprep.subr.mxu0 0.0
    %586 = vmatpush2.xpose.msra.mxu0 0.0
    %587 = vmatprep.subr.mxu0 0.0
    %588 = vmatpush2.xpose.msra.mxu0 0.0
    %589 = vmatprep.subr.mxu0 0.0
    %590 = vmatpush2.xpose.msra.mxu0 0.0
    %591 = vmatprep.subr.mxu0 0.0
    %592 = vmatpush2.xpose.msra.mxu0 0.0
    %593 = vmatprep.subr.mxu0 0.0
    %594 = vmatpush2.xpose.msra.mxu0 0.0
    %595 = vmatprep.subr.mxu0 0.0
    %596 = vmatpush2.xpose.msra.mxu0 0.0
    %597 = vmatprep.subr.mxu0 0.0
    %598 = vmatpush2.xpose.msra.mxu0 0.0
    %599 = vmatprep.subr.mxu0 0.0
    %600 = vmatpush2.xpose.msra.mxu0 0.0
    %601 = vmatprep.subr.mxu0 0.0
    %602 = vmatpush2.xpose.msra.mxu0 0.0
    %603 = vmatprep.subr.mxu0 0.0
    %604 = vmatpush2.xpose.msra.mxu0 0.0
    %605 = vmatprep.subr.mxu0 0.0
    %606 = vmatpush2.xpose.msra.mxu0 0.0
    %607 = vmatprep.subr.mxu0 0.0
    %608 = vmatpush2.xpose.msra.mxu0 0.0
    %609 = vmatprep.subr.mxu0 0.0
    %610 = vmatpush2.xpose.msra.mxu0 0.0
    %611 = vmatprep.subr.mxu0 0.0
    %612 = vmatpush2.xpose.msra.mxu0 0.0
    %613 = vmatprep.mubr.f32.mxu0 0.0
    %614 = vmatmul.mubr.f32.gmra.mxu0 %v547
    %v615 = vpop.f32.mrf.mxu0
    %v616 = vadd.f32 0.0, %v615
    %v617 = vpop.f32.mrf.mxu0
    %618 = vdwg.mxu0
    %v620 = vrot.slane %v616, 2
    %v622 = vadd.f32 %v181, %v620
    %v623 = vmul.f32 %v622, 0.5
    %v624 = vtanh.pop %v623
    %v625 = vadd.f32 %v624, 1.0
    %v626 = vmul.f32 %v625, 0.5
    %v627 = vtanh.pop %v622
    %v629 = vrot.slane %v536, 6
    %v631 = vmul.f32 %v626, %v629
    %633 = vrot.lane.b32.xlu0 %v627, 64
    %v634 = vpop.permute.xlu0 %633
    %v636 = vmul.f32 %v626, %v634
    %638 = vrot.lane.b32.xlu0 %v636, 32
    %v639 = vpop.permute.xlu0 %638
    %v641 = vadd.f32 %v631, %v639
    %v642 = vtanh.pop %v641
    %644 = vrot.lane.b32.xlu0 %v642, 64
    %v645 = vpop.permute.xlu0 %644
    %v647 = vmul.f32 %v626, %v645
    %v649 = vrot.slane %v647, 6
    %650 = vrot.lane.b32.xlu0 %v649, 32
    %v651 = vpop.permute.xlu0 %650
    %v652 = vsel %vm189, %v651, 0
    %654 = vmatprep.subr.mxu0 0.0
    %655 = vmatpush1.xpose.msra.mxu0 %v239
    %656 = vmatprep.subr.mxu0 0.0
    %657 = vmatpush1.xpose.msra.mxu0 %v236
    %658 = vmatprep.subr.mxu0 0.0
    %659 = vmatpush1.xpose.msra.mxu0 %v233
    %660 = vmatprep.subr.mxu0 0.0
    %661 = vmatpush1.xpose.msra.mxu0 %v230
    %662 = vmatprep.subr.mxu0 0.0
    %663 = vmatpush1.xpose.msra.mxu0 %v227
    %664 = vmatprep.subr.mxu0 0.0
    %665 = vmatpush1.xpose.msra.mxu0 %v224
    %666 = vmatprep.subr.mxu0 0.0
    %667 = vmatpush1.xpose.msra.mxu0 %v221
    %668 = vmatprep.subr.mxu0 0.0
    %669 = vmatpush1.xpose.msra.mxu0 %v218
    %670 = vmatprep.subr.mxu0 0.0
    %671 = vmatpush1.xpose.msra.mxu0 %v215
    %672 = vmatprep.subr.mxu0 0.0
    %673 = vmatpush1.xpose.msra.mxu0 %v212
    %674 = vmatprep.subr.mxu0 0.0
    %675 = vmatpush1.xpose.msra.mxu0 %v209
    %676 = vmatprep.subr.mxu0 0.0
    %677 = vmatpush1.xpose.msra.mxu0 %v206
    %678 = vmatprep.subr.mxu0 0.0
    %679 = vmatpush1.xpose.msra.mxu0 %v203
    %680 = vmatprep.subr.mxu0 0.0
    %681 = vmatpush1.xpose.msra.mxu0 %v200
    %682 = vmatprep.subr.mxu0 0.0
    %683 = vmatpush1.xpose.msra.mxu0 %v197
    %684 = vmatprep.subr.mxu0 0.0
    %685 = vmatpush1.xpose.msra.mxu0 %v194
    %686 = vmatprep.subr.mxu0 0.0
    %687 = vmatpush2.xpose.msra.mxu0 0.0
    %688 = vmatprep.subr.mxu0 0.0
    %689 = vmatpush2.xpose.msra.mxu0 0.0
    %690 = vmatprep.subr.mxu0 0.0
    %691 = vmatpush2.xpose.msra.mxu0 0.0
    %692 = vmatprep.subr.mxu0 0.0
    %693 = vmatpush2.xpose.msra.mxu0 0.0
    %694 = vmatprep.subr.mxu0 0.0
    %695 = vmatpush2.xpose.msra.mxu0 0.0
    %696 = vmatprep.subr.mxu0 0.0
    %697 = vmatpush2.xpose.msra.mxu0 0.0
    %698 = vmatprep.subr.mxu0 0.0
    %699 = vmatpush2.xpose.msra.mxu0 0.0
    %700 = vmatprep.subr.mxu0 0.0
    %701 = vmatpush2.xpose.msra.mxu0 0.0
    %702 = vmatprep.subr.mxu0 0.0
    %703 = vmatpush2.xpose.msra.mxu0 0.0
    %704 = vmatprep.subr.mxu0 0.0
    %705 = vmatpush2.xpose.msra.mxu0 0.0
    %706 = vmatprep.subr.mxu0 0.0
    %707 = vmatpush2.xpose.msra.mxu0 0.0
    %708 = vmatprep.subr.mxu0 0.0
    %709 = vmatpush2.xpose.msra.mxu0 0.0
    %710 = vmatprep.subr.mxu0 0.0
    %711 = vmatpush2.xpose.msra.mxu0 0.0
    %712 = vmatprep.subr.mxu0 0.0
    %713 = vmatpush2.xpose.msra.mxu0 0.0
    %714 = vmatprep.subr.mxu0 0.0
    %715 = vmatpush2.xpose.msra.mxu0 0.0
    %716 = vmatprep.subr.mxu0 0.0
    %717 = vmatpush2.xpose.msra.mxu0 0.0
    %718 = vmatprep.mubr.f32.mxu0 0.0
    %719 = vmatmul.mubr.f32.gmra.mxu0 %v652
    %v720 = vpop.f32.mrf.mxu0
    %v721 = vadd.f32 0.0, %v720
    %v722 = vpop.f32.mrf.mxu0
    %723 = vdwg.mxu0
    %v724 = vadd.f32 %v186, %v721
    %v725 = vmul.f32 %v724, 0.5
    %v726 = vtanh.pop %v725
    %v727 = vadd.f32 %v726, 1.0
    %v728 = vmul.f32 %v727, 0.5
    %v729 = vtanh.pop %v724
    %v731 = vrot.slane %v641, 6
    %v733 = vmul.f32 %v728, %v731
    %735 = vrot.lane.b32.xlu0 %v729, 64
    %v736 = vpop.permute.xlu0 %735
    %v738 = vmul.f32 %v728, %v736
    %740 = vrot.lane.b32.xlu0 %v738, 32
    %v741 = vpop.permute.xlu0 %740
    %v743 = vadd.f32 %v733, %v741
    %v744 = vtanh.pop %v743
    %746 = vrot.lane.b32.xlu0 %v744, 64
    %v747 = vpop.permute.xlu0 %746
    %v749 = vmul.f32 %v728, %v747
    %751 = vrot.lane.b32.xlu0 %v749, 32
    %v752 = vpop.permute.xlu0 %751
    %v753 = vsel %vm189, %v752, 0
    %755 = vmatprep.subr.mxu0 0.0
    %756 = vmatpush1.xpose.msra.mxu0 %v239
    %757 = vmatprep.subr.mxu0 0.0
    %758 = vmatpush1.xpose.msra.mxu0 %v236
    %759 = vmatprep.subr.mxu0 0.0
    %760 = vmatpush1.xpose.msra.mxu0 %v233
    %761 = vmatprep.subr.mxu0 0.0
    %762 = vmatpush1.xpose.msra.mxu0 %v230
    %763 = vmatprep.subr.mxu0 0.0
    %764 = vmatpush1.xpose.msra.mxu0 %v227
    %765 = vmatprep.subr.mxu0 0.0
    %766 = vmatpush1.xpose.msra.mxu0 %v224
    %767 = vmatprep.subr.mxu0 0.0
    %768 = vmatpush1.xpose.msra.mxu0 %v221
    %769 = vmatprep.subr.mxu0 0.0
    %770 = vmatpush1.xpose.msra.mxu0 %v218
    %771 = vmatprep.subr.mxu0 0.0
    %772 = vmatpush1.xpose.msra.mxu0 %v215
    %773 = vmatprep.subr.mxu0 0.0
    %774 = vmatpush1.xpose.msra.mxu0 %v212
    %775 = vmatprep.subr.mxu0 0.0
    %776 = vmatpush1.xpose.msra.mxu0 %v209
    %777 = vmatprep.subr.mxu0 0.0
    %778 = vmatpush1.xpose.msra.mxu0 %v206
    %779 = vmatprep.subr.mxu0 0.0
    %780 = vmatpush1.xpose.msra.mxu0 %v203
    %781 = vmatprep.subr.mxu0 0.0
    %782 = vmatpush1.xpose.msra.mxu0 %v200
    %783 = vmatprep.subr.mxu0 0.0
    %784 = vmatpush1.xpose.msra.mxu0 %v197
    %785 = vmatprep.subr.mxu0 0.0
    %786 = vmatpush1.xpose.msra.mxu0 %v194
    %787 = vmatprep.subr.mxu0 0.0
    %788 = vmatpush2.xpose.msra.mxu0 0.0
    %789 = vmatprep.subr.mxu0 0.0
    %790 = vmatpush2.xpose.msra.mxu0 0.0
    %791 = vmatprep.subr.mxu0 0.0
    %792 = vmatpush2.xpose.msra.mxu0 0.0
    %793 = vmatprep.subr.mxu0 0.0
    %794 = vmatpush2.xpose.msra.mxu0 0.0
    %795 = vmatprep.subr.mxu0 0.0
    %796 = vmatpush2.xpose.msra.mxu0 0.0
    %797 = vmatprep.subr.mxu0 0.0
    %798 = vmatpush2.xpose.msra.mxu0 0.0
    %799 = vmatprep.subr.mxu0 0.0
    %800 = vmatpush2.xpose.msra.mxu0 0.0
    %801 = vmatprep.subr.mxu0 0.0
    %802 = vmatpush2.xpose.msra.mxu0 0.0
    %803 = vmatprep.subr.mxu0 0.0
    %804 = vmatpush2.xpose.msra.mxu0 0.0
    %805 = vmatprep.subr.mxu0 0.0
    %806 = vmatpush2.xpose.msra.mxu0 0.0
    %807 = vmatprep.subr.mxu0 0.0
    %808 = vmatpush2.xpose.msra.mxu0 0.0
    %809 = vmatprep.subr.mxu0 0.0
    %810 = vmatpush2.xpose.msra.mxu0 0.0
    %811 = vmatprep.subr.mxu0 0.0
    %812 = vmatpush2.xpose.msra.mxu0 0.0
    %813 = vmatprep.subr.mxu0 0.0
    %814 = vmatpush2.xpose.msra.mxu0 0.0
    %815 = vmatprep.subr.mxu0 0.0
    %816 = vmatpush2.xpose.msra.mxu0 0.0
    %817 = vmatprep.subr.mxu0 0.0
    %818 = vmatpush2.xpose.msra.mxu0 0.0
    %819 = vmatprep.mubr.f32.mxu0 0.0
    %820 = vmatmul.mubr.f32.gmra.mxu0 %v753
    %v821 = vpop.f32.mrf.mxu0
    %v822 = vadd.f32 0.0, %v821
    %v823 = vpop.f32.mrf.mxu0
    %824 = vdwg.mxu0
    %v826 = vrot.slane %v822, 6
    %v828 = vadd.f32 %v186, %v826
    %v829 = vmul.f32 %v828, 0.5
    %v830 = vtanh.pop %v829
    %v831 = vadd.f32 %v830, 1.0
    %v832 = vmul.f32 %v831, 0.5
    %v833 = vtanh.pop %v828
    %v835 = vrot.slane %v743, 6
    %v837 = vmul.f32 %v832, %v835
    %839 = vrot.lane.b32.xlu0 %v833, 64
    %v840 = vpop.permute.xlu0 %839
    %v842 = vmul.f32 %v832, %v840
    %844 = vrot.lane.b32.xlu0 %v842, 32
    %v845 = vpop.permute.xlu0 %844
    %v847 = vadd.f32 %v837, %v845
    %v848 = vtanh.pop %v847
    %850 = vrot.lane.b32.xlu0 %v848, 64
    %v851 = vpop.permute.xlu0 %850
    %v853 = vmul.f32 %v832, %v851
    %v855 = vrot.slane %v853, 2
    %856 = vrot.lane.b32.xlu0 %v855, 32
    %v857 = vpop.permute.xlu0 %856
    %v858 = vsel %vm189, %v857, 0
    %860 = vmatprep.subr.mxu0 0.0
    %861 = vmatpush1.xpose.msra.mxu0 %v239
    %862 = vmatprep.subr.mxu0 0.0
    %863 = vmatpush1.xpose.msra.mxu0 %v236
    %864 = vmatprep.subr.mxu0 0.0
    %865 = vmatpush1.xpose.msra.mxu0 %v233
    %866 = vmatprep.subr.mxu0 0.0
    %867 = vmatpush1.xpose.msra.mxu0 %v230
    %868 = vmatprep.subr.mxu0 0.0
    %869 = vmatpush1.xpose.msra.mxu0 %v227
    %870 = vmatprep.subr.mxu0 0.0
    %871 = vmatpush1.xpose.msra.mxu0 %v224
    %872 = vmatprep.subr.mxu0 0.0
    %873 = vmatpush1.xpose.msra.mxu0 %v221
    %874 = vmatprep.subr.mxu0 0.0
    %875 = vmatpush1.xpose.msra.mxu0 %v218
    %876 = vmatprep.subr.mxu0 0.0
    %877 = vmatpush1.xpose.msra.mxu0 %v215
    %878 = vmatprep.subr.mxu0 0.0
    %879 = vmatpush1.xpose.msra.mxu0 %v212
    %880 = vmatprep.subr.mxu0 0.0
    %881 = vmatpush1.xpose.msra.mxu0 %v209
    %882 = vmatprep.subr.mxu0 0.0
    %883 = vmatpush1.xpose.msra.mxu0 %v206
    %884 = vmatprep.subr.mxu0 0.0
    %885 = vmatpush1.xpose.msra.mxu0 %v203
    %886 = vmatprep.subr.mxu0 0.0
    %887 = vmatpush1.xpose.msra.mxu0 %v200
    %888 = vmatprep.subr.mxu0 0.0
    %889 = vmatpush1.xpose.msra.mxu0 %v197
    %890 = vmatprep.subr.mxu0 0.0
    %891 = vmatpush1.xpose.msra.mxu0 %v194
    %892 = vmatprep.subr.mxu0 0.0
    %893 = vmatpush2.xpose.msra.mxu0 0.0
    %894 = vmatprep.subr.mxu0 0.0
    %895 = vmatpush2.xpose.msra.mxu0 0.0
    %896 = vmatprep.subr.mxu0 0.0
    %897 = vmatpush2.xpose.msra.mxu0 0.0
    %898 = vmatprep.subr.mxu0 0.0
    %899 = vmatpush2.xpose.msra.mxu0 0.0
    %900 = vmatprep.subr.mxu0 0.0
    %901 = vmatpush2.xpose.msra.mxu0 0.0
    %902 = vmatprep.subr.mxu0 0.0
    %903 = vmatpush2.xpose.msra.mxu0 0.0
    %904 = vmatprep.subr.mxu0 0.0
    %905 = vmatpush2.xpose.msra.mxu0 0.0
    %906 = vmatprep.subr.mxu0 0.0
    %907 = vmatpush2.xpose.msra.mxu0 0.0
    %908 = vmatprep.subr.mxu0 0.0
    %909 = vmatpush2.xpose.msra.mxu0 0.0
    %910 = vmatprep.subr.mxu0 0.0
    %911 = vmatpush2.xpose.msra.mxu0 0.0
    %912 = vmatprep.subr.mxu0 0.0
    %913 = vmatpush2.xpose.msra.mxu0 0.0
    %914 = vmatprep.subr.mxu0 0.0
    %915 = vmatpush2.xpose.msra.mxu0 0.0
    %916 = vmatprep.subr.mxu0 0.0
    %917 = vmatpush2.xpose.msra.mxu0 0.0
    %918 = vmatprep.subr.mxu0 0.0
    %919 = vmatpush2.xpose.msra.mxu0 0.0
    %920 = vmatprep.subr.mxu0 0.0
    %921 = vmatpush2.xpose.msra.mxu0 0.0
    %922 = vmatprep.subr.mxu0 0.0
    %923 = vmatpush2.xpose.msra.mxu0 0.0
    %924 = vmatprep.mubr.f32.mxu0 0.0
    %925 = vmatmul.mubr.f32.gmra.mxu0 %v858
    %v926 = vpop.f32.mrf.mxu0
    %v927 = vadd.f32 0.0, %v926
    %v928 = vpop.f32.mrf.mxu0
    %929 = vdwg.mxu0
    %v931 = vrot.slane %v927, 4
    %v933 = vadd.f32 %v186, %v931
    %v934 = vmul.f32 %v933, 0.5
    %v935 = vtanh.pop %v934
    %v936 = vadd.f32 %v935, 1.0
    %v937 = vmul.f32 %v936, 0.5
    %v938 = vtanh.pop %v933
    %v940 = vrot.slane %v847, 6
    %v942 = vmul.f32 %v937, %v940
    %944 = vrot.lane.b32.xlu0 %v938, 64
    %v945 = vpop.permute.xlu0 %944
    %v947 = vmul.f32 %v937, %v945
    %949 = vrot.lane.b32.xlu0 %v947, 32
    %v950 = vpop.permute.xlu0 %949
    %v952 = vadd.f32 %v942, %v950
    %v953 = vtanh.pop %v952
    %955 = vrot.lane.b32.xlu0 %v953, 64
    %v956 = vpop.permute.xlu0 %955
    %v958 = vmul.f32 %v937, %v956
    %v960 = vrot.slane %v958, 4
    %961 = vrot.lane.b32.xlu0 %v960, 32
    %v962 = vpop.permute.xlu0 %961
    %v963 = vsel %vm189, %v962, 0
    %965 = vmatprep.subr.mxu0 0.0
    %966 = vmatpush1.xpose.msra.mxu0 %v239
    %967 = vmatprep.subr.mxu0 0.0
    %968 = vmatpush1.xpose.msra.mxu0 %v236
    %969 = vmatprep.subr.mxu0 0.0
    %970 = vmatpush1.xpose.msra.mxu0 %v233
    %971 = vmatprep.subr.mxu0 0.0
    %972 = vmatpush1.xpose.msra.mxu0 %v230
    %973 = vmatprep.subr.mxu0 0.0
    %974 = vmatpush1.xpose.msra.mxu0 %v227
    %975 = vmatprep.subr.mxu0 0.0
    %976 = vmatpush1.xpose.msra.mxu0 %v224
    %977 = vmatprep.subr.mxu0 0.0
    %978 = vmatpush1.xpose.msra.mxu0 %v221
    %979 = vmatprep.subr.mxu0 0.0
    %980 = vmatpush1.xpose.msra.mxu0 %v218
    %981 = vmatprep.subr.mxu0 0.0
    %982 = vmatpush1.xpose.msra.mxu0 %v215
    %983 = vmatprep.subr.mxu0 0.0
    %984 = vmatpush1.xpose.msra.mxu0 %v212
    %985 = vmatprep.subr.mxu0 0.0
    %986 = vmatpush1.xpose.msra.mxu0 %v209
    %987 = vmatprep.subr.mxu0 0.0
    %988 = vmatpush1.xpose.msra.mxu0 %v206
    %989 = vmatprep.subr.mxu0 0.0
    %990 = vmatpush1.xpose.msra.mxu0 %v203
    %991 = vmatprep.subr.mxu0 0.0
    %992 = vmatpush1.xpose.msra.mxu0 %v200
    %993 = vmatprep.subr.mxu0 0.0
    %994 = vmatpush1.xpose.msra.mxu0 %v197
    %995 = vmatprep.subr.mxu0 0.0
    %996 = vmatpush1.xpose.msra.mxu0 %v194
    %997 = vmatprep.subr.mxu0 0.0
    %998 = vmatpush2.xpose.msra.mxu0 0.0
    %999 = vmatprep.subr.mxu0 0.0
    %1000 = vmatpush2.xpose.msra.mxu0 0.0
    %1001 = vmatprep.subr.mxu0 0.0
    %1002 = vmatpush2.xpose.msra.mxu0 0.0
    %1003 = vmatprep.subr.mxu0 0.0
    %1004 = vmatpush2.xpose.msra.mxu0 0.0
    %1005 = vmatprep.subr.mxu0 0.0
    %1006 = vmatpush2.xpose.msra.mxu0 0.0
    %1007 = vmatprep.subr.mxu0 0.0
    %1008 = vmatpush2.xpose.msra.mxu0 0.0
    %1009 = vmatprep.subr.mxu0 0.0
    %1010 = vmatpush2.xpose.msra.mxu0 0.0
    %1011 = vmatprep.subr.mxu0 0.0
    %1012 = vmatpush2.xpose.msra.mxu0 0.0
    %1013 = vmatprep.subr.mxu0 0.0
    %1014 = vmatpush2.xpose.msra.mxu0 0.0
    %1015 = vmatprep.subr.mxu0 0.0
    %1016 = vmatpush2.xpose.msra.mxu0 0.0
    %1017 = vmatprep.subr.mxu0 0.0
    %1018 = vmatpush2.xpose.msra.mxu0 0.0
    %1019 = vmatprep.subr.mxu0 0.0
    %1020 = vmatpush2.xpose.msra.mxu0 0.0
    %1021 = vmatprep.subr.mxu0 0.0
    %1022 = vmatpush2.xpose.msra.mxu0 0.0
    %1023 = vmatprep.subr.mxu0 0.0
    %1024 = vmatpush2.xpose.msra.mxu0 0.0
    %1025 = vmatprep.subr.mxu0 0.0
    %1026 = vmatpush2.xpose.msra.mxu0 0.0
    %1027 = vmatprep.subr.mxu0 0.0
    %1028 = vmatpush2.xpose.msra.mxu0 0.0
    %1029 = vmatprep.mubr.f32.mxu0 0.0
    %1030 = vmatmul.mubr.f32.gmra.mxu0 %v963
    %v1031 = vpop.f32.mrf.mxu0
    %v1032 = vadd.f32 0.0, %v1031
    %v1033 = vpop.f32.mrf.mxu0
    %1034 = vdwg.mxu0
    %v1036 = vrot.slane %v1032, 2
    %v1038 = vadd.f32 %v186, %v1036
    %v1039 = vmul.f32 %v1038, 0.5
    %v1040 = vtanh.pop %v1039
    %v1041 = vadd.f32 %v1040, 1.0
    %v1042 = vmul.f32 %v1041, 0.5
    %v1043 = vtanh.pop %v1038
    %v1045 = vrot.slane %v952, 6
    %v1047 = vmul.f32 %v1042, %v1045
    %1049 = vrot.lane.b32.xlu0 %v1043, 64
    %v1050 = vpop.permute.xlu0 %1049
    %v1052 = vmul.f32 %v1042, %v1050
    %1054 = vrot.lane.b32.xlu0 %v1052, 32
    %v1055 = vpop.permute.xlu0 %1054
    %v1057 = vadd.f32 %v1047, %v1055
    %v1058 = vtanh.pop %v1057
    %1060 = vrot.lane.b32.xlu0 %v1058, 64
    %v1061 = vpop.permute.xlu0 %1060
    %v1063 = vmul.f32 %v1042, %v1061
    %1065 = vrot.lane.b32.xlu0 %v1063, 32
    %v1066 = vpop.permute.xlu0 %1065
    %vm1068 = vcmask 261126
    %1069 = vst.msk [vmem:[#allocation2 - $0x6] sm:$0xc0] %vm1068, %v1066
    // Predicated region
    $region18: #{sensor_encoder_forward.1} parent=1 // pred_check
      _
    $region19: #{sensor_encoder_forward.1} parent=1 // pred_check_branch
      %1071 = sbr.rel (0) target = $region21
    $region20: #{sensor_encoder_forward.1} parent=1 // pred_region
      %s1073 = ssub.s32 32, 32
      %1074 = vsyncadd [#allocation3], %s1073
      %s1076 = sshll.u32 [#allocation2], 4
      %s1077 = int_to_ptr.vmem [resolvable:$true] %s1076
      %1079 = dma.vmem_to_hbm [thread:$0]  %s1077, 32, %s4, [#allocation3]
    $region21: #{sensor_encoder_forward.1} parent=1 // pred_fallthru
      _
    // Predicated region
    $region22: #{sensor_encoder_forward.1} parent=1 // pred_check
      _
    $region23: #{sensor_encoder_forward.1} parent=1 // pred_check_branch
      %1081 = sbr.rel (0) target = $region25
    $region24: #{sensor_encoder_forward.1} parent=1 // pred_region
      %1082 = dma.done [#allocation3], 32
    $region25: #{sensor_encoder_forward.1} parent=1 // pred_fallthru
      _
    %1083 = vsyncpa [#allocation3], 1

</llo_original>
